<compile_context>
chip_gen: v7x
topology: tpu7x:2x2x1
jax: 0.10.0
libtpu: 0.0.40
codegen_flags: <defaults>
</compile_context>

<pallas_src>
import functools
import jax
import jax.numpy as jnp
from jax.experimental import pallas as pl
from jax.experimental.pallas import tpu as pltpu


def _lstm_kernel(x_ref, wih_ref, whh_ref, b_ref, wout_ref, bout_ref, o_ref,
                 *, seq_len, batch, hidden_size):
    """Whole forward pass in one invocation.

    x_ref    : (S*Bp, I)      full input sequence, batch-padded & pre-flattened
    wih_ref  : (I, 4H)        input->gates weight (transposed, g-cols pre-scaled x2)
    whh_ref  : (H, 4H)        hidden->gates weight (transposed, g-cols pre-scaled x2)
    b_ref    : (1, 4H)        combined bias b_ih + b_hh (g-cols pre-scaled x2)
    wout_ref : (H, OP)        classifier weight (transposed, lane-padded to OP)
    bout_ref : (1, OP)        classifier bias (pad lanes = -1e30)
    o_ref    : (Bp, OP)       log-probabilities (padded; wrapper slices to (B, O))
    """
    S = seq_len
    Bp = batch
    H = hidden_size

    # ---- Hoist the non-recurrent input projection out of the serial loop. ----
    # One (S*Bp, I) @ (I, 4H) matmul; result stays register-resident (8 vregs).
    xg = (jnp.dot(x_ref[...], wih_ref[...], preferred_element_type=jnp.float32)
          + b_ref[...])                                   # (S*Bp, 4H)

    whh = whh_ref[...]                                    # recurrent weight, loaded once

    h = jnp.zeros((Bp, H), jnp.float32)
    c = jnp.zeros((Bp, H), jnp.float32)

    # Fully static unrolled recurrence (S is tiny); every slice index is a
    # Python int, so xg row-groups are single aligned vregs.  PyTorch gate
    # order is [i, f, g, o].  Because the g columns were pre-scaled by 2,
    # one sigmoid pass covers all four gates: tanh(x) = 2*sigmoid(2x) - 1.
    # TODO(synk): for large seq_len switch to lax.fori_loop with a bounded
    # unroll and a small VMEM staging buffer for xg.
    for t in range(S):
        gates = xg[t * Bp:(t + 1) * Bp, :] + jnp.dot(
            h, whh, preferred_element_type=jnp.float32)   # (Bp, 4H)
        sig = jax.nn.sigmoid(gates)                       # single EUP pass

        i_g = sig[:, 0 * H:1 * H]
        f_g = sig[:, 1 * H:2 * H]
        g_g = 2.0 * sig[:, 2 * H:3 * H] - 1.0             # == tanh(unscaled g pre-act)
        o_g = sig[:, 3 * H:4 * H]

        c = f_g * c + i_g * g_g
        h = o_g * jnp.tanh(c)

    # hidden2Cat on lstm_out[-1], then log_softmax.  Padded lanes have bias
    # -1e30, so exp underflows to 0 and they do not perturb the real columns.
    logits = (jnp.dot(h, wout_ref[...], preferred_element_type=jnp.float32)
              + bout_ref[...])                            # (Bp, OP)
    m = jnp.max(logits, axis=1, keepdims=True)
    z = logits - m
    lse = jnp.log(jnp.sum(jnp.exp(z), axis=1, keepdims=True))
    o_ref[...] = z - lse


def rnn_forward(x, params):
    """x: (seq_len, B, I) float32 -> (B, O) float32 log-probabilities."""
    seq_len, B, I = x.shape
    w_ih_t = params["w_ih_t"]    # (I, 4H)
    w_hh_t = params["w_hh_t"]    # (H, 4H)
    b_all = params["b_all"]      # (1, 4H)
    w_out_t = params["w_out_t"]  # (H, O)
    b_out = params["b_out"]      # (1, O)
    H = w_hh_t.shape[0]
    O = w_out_t.shape[1]

    # ---- tanh -> sigmoid fold: pre-scale the g-gate columns (2H:3H) by 2. ----
    g_scale = jnp.ones((4 * H,), jnp.float32).at[2 * H:3 * H].set(2.0)
    w_ih_s = w_ih_t * g_scale
    w_hh_s = w_hh_t * g_scale
    b_all_s = b_all * g_scale

    # ---- Fill all 8 sublanes: pad batch to 8 and flatten time/batch here. ----
    BP = 8
    x_pad = jnp.zeros((seq_len, BP, I), jnp.float32).at[:, :B, :].set(x)
    x_flat = x_pad.reshape(seq_len * BP, I)   # wrapper-level reshape: free metadata

    # ---- Lane-pad the classifier head to 128 for a dense output store. ----
    OP = max(128, ((O + 127) // 128) * 128)
    w_out_pad = jnp.zeros((H, OP), jnp.float32).at[:, :O].set(w_out_t)
    b_out_pad = jnp.full((1, OP), -1e30, jnp.float32).at[:, :O].set(b_out)

    kernel = functools.partial(_lstm_kernel, seq_len=seq_len, batch=BP,
                               hidden_size=H)

    out_pad = pl.pallas_call(
        kernel,
        out_shape=jax.ShapeDtypeStruct((BP, OP), jnp.float32),
        grid_spec=pltpu.PrefetchScalarGridSpec(
            num_scalar_prefetch=0,
            grid=(1,),  # single invocation: everything fits comfortably in VMEM
            in_specs=[
                pl.BlockSpec((seq_len * BP, I), lambda i: (0, 0)),
                pl.BlockSpec((I, 4 * H), lambda i: (0, 0)),
                pl.BlockSpec((H, 4 * H), lambda i: (0, 0)),
                pl.BlockSpec((1, 4 * H), lambda i: (0, 0)),
                pl.BlockSpec((H, OP), lambda i: (0, 0)),
                pl.BlockSpec((1, OP), lambda i: (0, 0)),
            ],
            out_specs=pl.BlockSpec((BP, OP), lambda i: (0, 0)),
        ),
        compiler_params=pltpu.CompilerParams(
            dimension_semantics=("arbitrary",),
            # Tiny footprint (~100 KB) but make the scoped VMEM budget explicit
            # so the same code stays safe on v5e (16 MiB default scoped) and
            # v7x (64 MiB physical) if hidden_size / seq_len are scaled up.
            vmem_limit_bytes=16 * 1024 * 1024,
        ),
    )(x_flat, w_ih_s, w_hh_s, b_all_s, w_out_pad, b_out_pad)

    return out_pad[:B, :O]


def init_params(key, input_size, hidden_size, output_size):
    """Deterministic init mimicking PyTorch's uniform(-1/sqrt(H), 1/sqrt(H))."""
    ks = jax.random.split(key, 6)
    bound = 1.0 / jnp.sqrt(hidden_size)

    def u(k, shape):
        return jax.random.uniform(k, shape, jnp.float32, -bound, bound)

    w_ih = u(ks[0], (4 * hidden_size, input_size))   # PyTorch weight_ih_l0
    w_hh = u(ks[1], (4 * hidden_size, hidden_size))  # PyTorch weight_hh_l0
    b_ih = u(ks[2], (4 * hidden_size,))
    b_hh = u(ks[3], (4 * hidden_size,))
    w_out = u(ks[4], (output_size, hidden_size))     # hidden2Cat.weight
    b_out = u(ks[5], (output_size,))

    return {
        "w_ih_t": w_ih.T,                              # (I, 4H)
        "w_hh_t": w_hh.T,                              # (H, 4H)
        "b_all": (b_ih + b_hh).reshape(1, -1),         # (1, 4H)
        "w_out_t": w_out.T,                            # (H, O)
        "b_out": b_out.reshape(1, -1),                 # (1, O)
    }


def rnn_reference(x, params):
    """Pure-JAX reference of the same forward pass (standard LSTM math)."""
    seq_len, B, I = x.shape
    H = params["w_hh_t"].shape[0]
    h = jnp.zeros((B, H), jnp.float32)
    c = jnp.zeros((B, H), jnp.float32)
    for t in range(seq_len):
        gates = x[t] @ params["w_ih_t"] + h @ params["w_hh_t"] + params["b_all"]
        i_g = jax.nn.sigmoid(gates[:, 0 * H:1 * H])
        f_g = jax.nn.sigmoid(gates[:, 1 * H:2 * H])
        g_g = jnp.tanh(gates[:, 2 * H:3 * H])
        o_g = jax.nn.sigmoid(gates[:, 3 * H:4 * H])
        c = f_g * c + i_g * g_g
        h = o_g * jnp.tanh(c)
    logits = h @ params["w_out_t"] + params["b_out"]
    return jax.nn.log_softmax(logits, axis=1)


if __name__ == "__main__":
    SEQ, BATCH, INPUT, HIDDEN, OUTPUT = 8, 1, 16, 32, 8

    key = jax.random.PRNGKey(0)
    k_x, k_p = jax.random.split(key)
    x = jax.random.normal(k_x, (SEQ, BATCH, INPUT), jnp.float32)
    params = init_params(k_p, INPUT, HIDDEN, OUTPUT)

    out = rnn_forward(x, params)
    out = jax.block_until_ready(out)

    ref = rnn_reference(x, params)
    assert out.shape == (BATCH, OUTPUT)
    assert jnp.allclose(out, ref, atol=1e-5, rtol=1e-5), "mismatch vs pure-JAX reference"

    print("KERNEL_OK")
</pallas_src>

<mosaic_0001>
module attributes {stable_mosaic.version = 11 : i64} {
  func.func @_lstm_kernel(%arg0: i32, %arg1: memref<64x16xf32, #tpu.memory_space<vmem>>, %arg2: memref<16x128xf32, #tpu.memory_space<vmem>>, %arg3: memref<32x128xf32, #tpu.memory_space<vmem>>, %arg4: memref<1x128xf32, #tpu.memory_space<vmem>>, %arg5: memref<32x128xf32, #tpu.memory_space<vmem>>, %arg6: memref<1x128xf32, #tpu.memory_space<vmem>>, %arg7: memref<8x128xf32, #tpu.memory_space<vmem>>) attributes {dimension_semantics = [#tpu.dimension_semantics<arbitrary>], iteration_bounds = array<i64: 1>, scalar_prefetch = 0 : i64, scratch_operands = 0 : i64, tpu.core_type = #tpu.core_type<tc>, window_params = [{pipeline_mode = #tpu.pipeline_mode<synchronous>, transform_indices = @transform_0, window_bounds = array<i64: 64, 16>}, {pipeline_mode = #tpu.pipeline_mode<synchronous>, transform_indices = @transform_1, window_bounds = array<i64: 16, 128>}, {pipeline_mode = #tpu.pipeline_mode<synchronous>, transform_indices = @transform_2, window_bounds = array<i64: 32, 128>}, {pipeline_mode = #tpu.pipeline_mode<synchronous>, transform_indices = @transform_3, window_bounds = array<i64: 1, 128>}, {pipeline_mode = #tpu.pipeline_mode<synchronous>, transform_indices = @transform_4, window_bounds = array<i64: 32, 128>}, {pipeline_mode = #tpu.pipeline_mode<synchronous>, transform_indices = @transform_5, window_bounds = array<i64: 1, 128>}, {pipeline_mode = #tpu.pipeline_mode<synchronous>, transform_indices = @transform_6, window_bounds = array<i64: 8, 128>}]} {
    %c0 = arith.constant 0 : index
    %c0_0 = arith.constant 0 : index
    %0 = vector.load %arg1[%c0, %c0_0] : memref<64x16xf32, #tpu.memory_space<vmem>>, vector<64x16xf32>
    %c0_1 = arith.constant 0 : index
    %c0_2 = arith.constant 0 : index
    %1 = vector.load %arg2[%c0_1, %c0_2] : memref<16x128xf32, #tpu.memory_space<vmem>>, vector<16x128xf32>
    %cst = arith.constant dense<0.000000e+00> : vector<64x128xf32>
    %2 = tpu.matmul %0, %1, %cst {dimension_numbers = #tpu.dot_dimension_numbers<[1], [0], [0], [1], [0, 0, 1, 1], [], []>} : vector<64x16xf32>, vector<16x128xf32>, vector<64x128xf32> -> vector<64x128xf32>
    %c0_3 = arith.constant 0 : index
    %c0_4 = arith.constant 0 : index
    %3 = vector.load %arg4[%c0_3, %c0_4] : memref<1x128xf32, #tpu.memory_space<vmem>>, vector<1x128xf32>
    %4 = vector.broadcast %3 : vector<1x128xf32> to vector<64x128xf32>
    %5 = arith.addf %2, %4 : vector<64x128xf32>
    %c0_5 = arith.constant 0 : index
    %c0_6 = arith.constant 0 : index
    %6 = vector.load %arg3[%c0_5, %c0_6] : memref<32x128xf32, #tpu.memory_space<vmem>>, vector<32x128xf32>
    %cst_7 = arith.constant 0.000000e+00 : f32
    %7 = vector.broadcast %cst_7 : f32 to vector<8x32xf32>
    %cst_8 = arith.constant 0.000000e+00 : f32
    %8 = vector.broadcast %cst_8 : f32 to vector<8x32xf32>
    %9 = vector.extract_strided_slice %5 {offsets = [0, 0], sizes = [8, 128], strides = [1, 1]} : vector<64x128xf32> to vector<8x128xf32>
    %cst_9 = arith.constant dense<0.000000e+00> : vector<8x128xf32>
    %10 = tpu.matmul %7, %6, %cst_9 {dimension_numbers = #tpu.dot_dimension_numbers<[1], [0], [0], [1], [0, 0, 1, 1], [], []>} : vector<8x32xf32>, vector<32x128xf32>, vector<8x128xf32> -> vector<8x128xf32>
    %11 = arith.addf %9, %10 : vector<8x128xf32>
    %12 = arith.negf %11 : vector<8x128xf32>
    %13 = math.exp %12 : vector<8x128xf32>
    %cst_10 = arith.constant 1.000000e+00 : f32
    %14 = vector.broadcast %cst_10 : f32 to vector<8x128xf32>
    %15 = arith.addf %14, %13 : vector<8x128xf32>
    %16 = arith.divf %14, %15 : vector<8x128xf32>
    %17 = vector.extract_strided_slice %16 {offsets = [0, 0], sizes = [8, 32], strides = [1, 1]} : vector<8x128xf32> to vector<8x32xf32>
    %18 = vector.extract_strided_slice %16 {offsets = [0, 32], sizes = [8, 32], strides = [1, 1]} : vector<8x128xf32> to vector<8x32xf32>
    %19 = vector.extract_strided_slice %16 {offsets = [0, 64], sizes = [8, 32], strides = [1, 1]} : vector<8x128xf32> to vector<8x32xf32>
    %cst_11 = arith.constant 2.000000e+00 : f32
    %20 = vector.broadcast %cst_11 : f32 to vector<8x32xf32>
    %21 = arith.mulf %20, %19 : vector<8x32xf32>
    %cst_12 = arith.constant 1.000000e+00 : f32
    %22 = vector.broadcast %cst_12 : f32 to vector<8x32xf32>
    %23 = arith.subf %21, %22 : vector<8x32xf32>
    %24 = vector.extract_strided_slice %16 {offsets = [0, 96], sizes = [8, 32], strides = [1, 1]} : vector<8x128xf32> to vector<8x32xf32>
    %25 = arith.mulf %18, %8 : vector<8x32xf32>
    %26 = arith.mulf %17, %23 : vector<8x32xf32>
    %27 = arith.addf %25, %26 : vector<8x32xf32>
    %28 = math.tanh %27 : vector<8x32xf32>
    %29 = arith.mulf %24, %28 : vector<8x32xf32>
    %30 = vector.extract_strided_slice %5 {offsets = [8, 0], sizes = [8, 128], strides = [1, 1]} : vector<64x128xf32> to vector<8x128xf32>
    %cst_13 = arith.constant dense<0.000000e+00> : vector<8x128xf32>
    %31 = tpu.matmul %29, %6, %cst_13 {dimension_numbers = #tpu.dot_dimension_numbers<[1], [0], [0], [1], [0, 0, 1, 1], [], []>} : vector<8x32xf32>, vector<32x128xf32>, vector<8x128xf32> -> vector<8x128xf32>
    %32 = arith.addf %30, %31 : vector<8x128xf32>
    %33 = arith.negf %32 : vector<8x128xf32>
    %34 = math.exp %33 : vector<8x128xf32>
    %cst_14 = arith.constant 1.000000e+00 : f32
    %35 = vector.broadcast %cst_14 : f32 to vector<8x128xf32>
    %36 = arith.addf %35, %34 : vector<8x128xf32>
    %37 = arith.divf %35, %36 : vector<8x128xf32>
    %38 = vector.extract_strided_slice %37 {offsets = [0, 0], sizes = [8, 32], strides = [1, 1]} : vector<8x128xf32> to vector<8x32xf32>
    %39 = vector.extract_strided_slice %37 {offsets = [0, 32], sizes = [8, 32], strides = [1, 1]} : vector<8x128xf32> to vector<8x32xf32>
    %40 = vector.extract_strided_slice %37 {offsets = [0, 64], sizes = [8, 32], strides = [1, 1]} : vector<8x128xf32> to vector<8x32xf32>
    %cst_15 = arith.constant 2.000000e+00 : f32
    %41 = vector.broadcast %cst_15 : f32 to vector<8x32xf32>
    %42 = arith.mulf %41, %40 : vector<8x32xf32>
    %cst_16 = arith.constant 1.000000e+00 : f32
    %43 = vector.broadcast %cst_16 : f32 to vector<8x32xf32>
    %44 = arith.subf %42, %43 : vector<8x32xf32>
    %45 = vector.extract_strided_slice %37 {offsets = [0, 96], sizes = [8, 32], strides = [1, 1]} : vector<8x128xf32> to vector<8x32xf32>
    %46 = arith.mulf %39, %27 : vector<8x32xf32>
    %47 = arith.mulf %38, %44 : vector<8x32xf32>
    %48 = arith.addf %46, %47 : vector<8x32xf32>
    %49 = math.tanh %48 : vector<8x32xf32>
    %50 = arith.mulf %45, %49 : vector<8x32xf32>
    %51 = vector.extract_strided_slice %5 {offsets = [16, 0], sizes = [8, 128], strides = [1, 1]} : vector<64x128xf32> to vector<8x128xf32>
    %cst_17 = arith.constant dense<0.000000e+00> : vector<8x128xf32>
    %52 = tpu.matmul %50, %6, %cst_17 {dimension_numbers = #tpu.dot_dimension_numbers<[1], [0], [0], [1], [0, 0, 1, 1], [], []>} : vector<8x32xf32>, vector<32x128xf32>, vector<8x128xf32> -> vector<8x128xf32>
    %53 = arith.addf %51, %52 : vector<8x128xf32>
    %54 = arith.negf %53 : vector<8x128xf32>
    %55 = math.exp %54 : vector<8x128xf32>
    %cst_18 = arith.constant 1.000000e+00 : f32
    %56 = vector.broadcast %cst_18 : f32 to vector<8x128xf32>
    %57 = arith.addf %56, %55 : vector<8x128xf32>
    %58 = arith.divf %56, %57 : vector<8x128xf32>
    %59 = vector.extract_strided_slice %58 {offsets = [0, 0], sizes = [8, 32], strides = [1, 1]} : vector<8x128xf32> to vector<8x32xf32>
    %60 = vector.extract_strided_slice %58 {offsets = [0, 32], sizes = [8, 32], strides = [1, 1]} : vector<8x128xf32> to vector<8x32xf32>
    %61 = vector.extract_strided_slice %58 {offsets = [0, 64], sizes = [8, 32], strides = [1, 1]} : vector<8x128xf32> to vector<8x32xf32>
    %cst_19 = arith.constant 2.000000e+00 : f32
    %62 = vector.broadcast %cst_19 : f32 to vector<8x32xf32>
    %63 = arith.mulf %62, %61 : vector<8x32xf32>
    %cst_20 = arith.constant 1.000000e+00 : f32
    %64 = vector.broadcast %cst_20 : f32 to vector<8x32xf32>
    %65 = arith.subf %63, %64 : vector<8x32xf32>
    %66 = vector.extract_strided_slice %58 {offsets = [0, 96], sizes = [8, 32], strides = [1, 1]} : vector<8x128xf32> to vector<8x32xf32>
    %67 = arith.mulf %60, %48 : vector<8x32xf32>
    %68 = arith.mulf %59, %65 : vector<8x32xf32>
    %69 = arith.addf %67, %68 : vector<8x32xf32>
    %70 = math.tanh %69 : vector<8x32xf32>
    %71 = arith.mulf %66, %70 : vector<8x32xf32>
    %72 = vector.extract_strided_slice %5 {offsets = [24, 0], sizes = [8, 128], strides = [1, 1]} : vector<64x128xf32> to vector<8x128xf32>
    %cst_21 = arith.constant dense<0.000000e+00> : vector<8x128xf32>
    %73 = tpu.matmul %71, %6, %cst_21 {dimension_numbers = #tpu.dot_dimension_numbers<[1], [0], [0], [1], [0, 0, 1, 1], [], []>} : vector<8x32xf32>, vector<32x128xf32>, vector<8x128xf32> -> vector<8x128xf32>
    %74 = arith.addf %72, %73 : vector<8x128xf32>
    %75 = arith.negf %74 : vector<8x128xf32>
    %76 = math.exp %75 : vector<8x128xf32>
    %cst_22 = arith.constant 1.000000e+00 : f32
    %77 = vector.broadcast %cst_22 : f32 to vector<8x128xf32>
    %78 = arith.addf %77, %76 : vector<8x128xf32>
    %79 = arith.divf %77, %78 : vector<8x128xf32>
    %80 = vector.extract_strided_slice %79 {offsets = [0, 0], sizes = [8, 32], strides = [1, 1]} : vector<8x128xf32> to vector<8x32xf32>
    %81 = vector.extract_strided_slice %79 {offsets = [0, 32], sizes = [8, 32], strides = [1, 1]} : vector<8x128xf32> to vector<8x32xf32>
    %82 = vector.extract_strided_slice %79 {offsets = [0, 64], sizes = [8, 32], strides = [1, 1]} : vector<8x128xf32> to vector<8x32xf32>
    %cst_23 = arith.constant 2.000000e+00 : f32
    %83 = vector.broadcast %cst_23 : f32 to vector<8x32xf32>
    %84 = arith.mulf %83, %82 : vector<8x32xf32>
    %cst_24 = arith.constant 1.000000e+00 : f32
    %85 = vector.broadcast %cst_24 : f32 to vector<8x32xf32>
    %86 = arith.subf %84, %85 : vector<8x32xf32>
    %87 = vector.extract_strided_slice %79 {offsets = [0, 96], sizes = [8, 32], strides = [1, 1]} : vector<8x128xf32> to vector<8x32xf32>
    %88 = arith.mulf %81, %69 : vector<8x32xf32>
    %89 = arith.mulf %80, %86 : vector<8x32xf32>
    %90 = arith.addf %88, %89 : vector<8x32xf32>
    %91 = math.tanh %90 : vector<8x32xf32>
    %92 = arith.mulf %87, %91 : vector<8x32xf32>
    %93 = vector.extract_strided_slice %5 {offsets = [32, 0], sizes = [8, 128], strides = [1, 1]} : vector<64x128xf32> to vector<8x128xf32>
    %cst_25 = arith.constant dense<0.000000e+00> : vector<8x128xf32>
    %94 = tpu.matmul %92, %6, %cst_25 {dimension_numbers = #tpu.dot_dimension_numbers<[1], [0], [0], [1], [0, 0, 1, 1], [], []>} : vector<8x32xf32>, vector<32x128xf32>, vector<8x128xf32> -> vector<8x128xf32>
    %95 = arith.addf %93, %94 : vector<8x128xf32>
    %96 = arith.negf %95 : vector<8x128xf32>
    %97 = math.exp %96 : vector<8x128xf32>
    %cst_26 = arith.constant 1.000000e+00 : f32
    %98 = vector.broadcast %cst_26 : f32 to vector<8x128xf32>
    %99 = arith.addf %98, %97 : vector<8x128xf32>
    %100 = arith.divf %98, %99 : vector<8x128xf32>
    %101 = vector.extract_strided_slice %100 {offsets = [0, 0], sizes = [8, 32], strides = [1, 1]} : vector<8x128xf32> to vector<8x32xf32>
    %102 = vector.extract_strided_slice %100 {offsets = [0, 32], sizes = [8, 32], strides = [1, 1]} : vector<8x128xf32> to vector<8x32xf32>
    %103 = vector.extract_strided_slice %100 {offsets = [0, 64], sizes = [8, 32], strides = [1, 1]} : vector<8x128xf32> to vector<8x32xf32>
    %cst_27 = arith.constant 2.000000e+00 : f32
    %104 = vector.broadcast %cst_27 : f32 to vector<8x32xf32>
    %105 = arith.mulf %104, %103 : vector<8x32xf32>
    %cst_28 = arith.constant 1.000000e+00 : f32
    %106 = vector.broadcast %cst_28 : f32 to vector<8x32xf32>
    %107 = arith.subf %105, %106 : vector<8x32xf32>
    %108 = vector.extract_strided_slice %100 {offsets = [0, 96], sizes = [8, 32], strides = [1, 1]} : vector<8x128xf32> to vector<8x32xf32>
    %109 = arith.mulf %102, %90 : vector<8x32xf32>
    %110 = arith.mulf %101, %107 : vector<8x32xf32>
    %111 = arith.addf %109, %110 : vector<8x32xf32>
    %112 = math.tanh %111 : vector<8x32xf32>
    %113 = arith.mulf %108, %112 : vector<8x32xf32>
    %114 = vector.extract_strided_slice %5 {offsets = [40, 0], sizes = [8, 128], strides = [1, 1]} : vector<64x128xf32> to vector<8x128xf32>
    %cst_29 = arith.constant dense<0.000000e+00> : vector<8x128xf32>
    %115 = tpu.matmul %113, %6, %cst_29 {dimension_numbers = #tpu.dot_dimension_numbers<[1], [0], [0], [1], [0, 0, 1, 1], [], []>} : vector<8x32xf32>, vector<32x128xf32>, vector<8x128xf32> -> vector<8x128xf32>
    %116 = arith.addf %114, %115 : vector<8x128xf32>
    %117 = arith.negf %116 : vector<8x128xf32>
    %118 = math.exp %117 : vector<8x128xf32>
    %cst_30 = arith.constant 1.000000e+00 : f32
    %119 = vector.broadcast %cst_30 : f32 to vector<8x128xf32>
    %120 = arith.addf %119, %118 : vector<8x128xf32>
    %121 = arith.divf %119, %120 : vector<8x128xf32>
    %122 = vector.extract_strided_slice %121 {offsets = [0, 0], sizes = [8, 32], strides = [1, 1]} : vector<8x128xf32> to vector<8x32xf32>
    %123 = vector.extract_strided_slice %121 {offsets = [0, 32], sizes = [8, 32], strides = [1, 1]} : vector<8x128xf32> to vector<8x32xf32>
    %124 = vector.extract_strided_slice %121 {offsets = [0, 64], sizes = [8, 32], strides = [1, 1]} : vector<8x128xf32> to vector<8x32xf32>
    %cst_31 = arith.constant 2.000000e+00 : f32
    %125 = vector.broadcast %cst_31 : f32 to vector<8x32xf32>
    %126 = arith.mulf %125, %124 : vector<8x32xf32>
    %cst_32 = arith.constant 1.000000e+00 : f32
    %127 = vector.broadcast %cst_32 : f32 to vector<8x32xf32>
    %128 = arith.subf %126, %127 : vector<8x32xf32>
    %129 = vector.extract_strided_slice %121 {offsets = [0, 96], sizes = [8, 32], strides = [1, 1]} : vector<8x128xf32> to vector<8x32xf32>
    %130 = arith.mulf %123, %111 : vector<8x32xf32>
    %131 = arith.mulf %122, %128 : vector<8x32xf32>
    %132 = arith.addf %130, %131 : vector<8x32xf32>
    %133 = math.tanh %132 : vector<8x32xf32>
    %134 = arith.mulf %129, %133 : vector<8x32xf32>
    %135 = vector.extract_strided_slice %5 {offsets = [48, 0], sizes = [8, 128], strides = [1, 1]} : vector<64x128xf32> to vector<8x128xf32>
    %cst_33 = arith.constant dense<0.000000e+00> : vector<8x128xf32>
    %136 = tpu.matmul %134, %6, %cst_33 {dimension_numbers = #tpu.dot_dimension_numbers<[1], [0], [0], [1], [0, 0, 1, 1], [], []>} : vector<8x32xf32>, vector<32x128xf32>, vector<8x128xf32> -> vector<8x128xf32>
    %137 = arith.addf %135, %136 : vector<8x128xf32>
    %138 = arith.negf %137 : vector<8x128xf32>
    %139 = math.exp %138 : vector<8x128xf32>
    %cst_34 = arith.constant 1.000000e+00 : f32
    %140 = vector.broadcast %cst_34 : f32 to vector<8x128xf32>
    %141 = arith.addf %140, %139 : vector<8x128xf32>
    %142 = arith.divf %140, %141 : vector<8x128xf32>
    %143 = vector.extract_strided_slice %142 {offsets = [0, 0], sizes = [8, 32], strides = [1, 1]} : vector<8x128xf32> to vector<8x32xf32>
    %144 = vector.extract_strided_slice %142 {offsets = [0, 32], sizes = [8, 32], strides = [1, 1]} : vector<8x128xf32> to vector<8x32xf32>
    %145 = vector.extract_strided_slice %142 {offsets = [0, 64], sizes = [8, 32], strides = [1, 1]} : vector<8x128xf32> to vector<8x32xf32>
    %cst_35 = arith.constant 2.000000e+00 : f32
    %146 = vector.broadcast %cst_35 : f32 to vector<8x32xf32>
    %147 = arith.mulf %146, %145 : vector<8x32xf32>
    %cst_36 = arith.constant 1.000000e+00 : f32
    %148 = vector.broadcast %cst_36 : f32 to vector<8x32xf32>
    %149 = arith.subf %147, %148 : vector<8x32xf32>
    %150 = vector.extract_strided_slice %142 {offsets = [0, 96], sizes = [8, 32], strides = [1, 1]} : vector<8x128xf32> to vector<8x32xf32>
    %151 = arith.mulf %144, %132 : vector<8x32xf32>
    %152 = arith.mulf %143, %149 : vector<8x32xf32>
    %153 = arith.addf %151, %152 : vector<8x32xf32>
    %154 = math.tanh %153 : vector<8x32xf32>
    %155 = arith.mulf %150, %154 : vector<8x32xf32>
    %156 = vector.extract_strided_slice %5 {offsets = [56, 0], sizes = [8, 128], strides = [1, 1]} : vector<64x128xf32> to vector<8x128xf32>
    %cst_37 = arith.constant dense<0.000000e+00> : vector<8x128xf32>
    %157 = tpu.matmul %155, %6, %cst_37 {dimension_numbers = #tpu.dot_dimension_numbers<[1], [0], [0], [1], [0, 0, 1, 1], [], []>} : vector<8x32xf32>, vector<32x128xf32>, vector<8x128xf32> -> vector<8x128xf32>
    %158 = arith.addf %156, %157 : vector<8x128xf32>
    %159 = arith.negf %158 : vector<8x128xf32>
    %160 = math.exp %159 : vector<8x128xf32>
    %cst_38 = arith.constant 1.000000e+00 : f32
    %161 = vector.broadcast %cst_38 : f32 to vector<8x128xf32>
    %162 = arith.addf %161, %160 : vector<8x128xf32>
    %163 = arith.divf %161, %162 : vector<8x128xf32>
    %164 = vector.extract_strided_slice %163 {offsets = [0, 0], sizes = [8, 32], strides = [1, 1]} : vector<8x128xf32> to vector<8x32xf32>
    %165 = vector.extract_strided_slice %163 {offsets = [0, 32], sizes = [8, 32], strides = [1, 1]} : vector<8x128xf32> to vector<8x32xf32>
    %166 = vector.extract_strided_slice %163 {offsets = [0, 64], sizes = [8, 32], strides = [1, 1]} : vector<8x128xf32> to vector<8x32xf32>
    %cst_39 = arith.constant 2.000000e+00 : f32
    %167 = vector.broadcast %cst_39 : f32 to vector<8x32xf32>
    %168 = arith.mulf %167, %166 : vector<8x32xf32>
    %cst_40 = arith.constant 1.000000e+00 : f32
    %169 = vector.broadcast %cst_40 : f32 to vector<8x32xf32>
    %170 = arith.subf %168, %169 : vector<8x32xf32>
    %171 = vector.extract_strided_slice %163 {offsets = [0, 96], sizes = [8, 32], strides = [1, 1]} : vector<8x128xf32> to vector<8x32xf32>
    %172 = arith.mulf %165, %153 : vector<8x32xf32>
    %173 = arith.mulf %164, %170 : vector<8x32xf32>
    %174 = arith.addf %172, %173 : vector<8x32xf32>
    %175 = math.tanh %174 : vector<8x32xf32>
    %176 = arith.mulf %171, %175 : vector<8x32xf32>
    %c0_41 = arith.constant 0 : index
    %c0_42 = arith.constant 0 : index
    %177 = vector.load %arg5[%c0_41, %c0_42] : memref<32x128xf32, #tpu.memory_space<vmem>>, vector<32x128xf32>
    %cst_43 = arith.constant dense<0.000000e+00> : vector<8x128xf32>
    %178 = tpu.matmul %176, %177, %cst_43 {dimension_numbers = #tpu.dot_dimension_numbers<[1], [0], [0], [1], [0, 0, 1, 1], [], []>} : vector<8x32xf32>, vector<32x128xf32>, vector<8x128xf32> -> vector<8x128xf32>
    %c0_44 = arith.constant 0 : index
    %c0_45 = arith.constant 0 : index
    %179 = vector.load %arg6[%c0_44, %c0_45] : memref<1x128xf32, #tpu.memory_space<vmem>>, vector<1x128xf32>
    %180 = vector.broadcast %179 : vector<1x128xf32> to vector<8x128xf32>
    %181 = arith.addf %178, %180 : vector<8x128xf32>
    %cst_46 = arith.constant dense<0xFF800000> : vector<8xf32>
    %182 = vector.multi_reduction <maximumf>, %181, %cst_46 [1] : vector<8x128xf32> to vector<8xf32>
    %183 = vector.shape_cast %182 : vector<8xf32> to vector<8x1xf32>
    %184 = vector.broadcast %183 : vector<8x1xf32> to vector<8x128xf32>
    %185 = arith.subf %181, %184 : vector<8x128xf32>
    %186 = math.exp %185 : vector<8x128xf32>
    %cst_47 = arith.constant dense<0.000000e+00> : vector<8xf32>
    %187 = vector.multi_reduction <add>, %186, %cst_47 [1] : vector<8x128xf32> to vector<8xf32>
    %188 = vector.shape_cast %187 : vector<8xf32> to vector<8x1xf32>
    %189 = math.log %188 : vector<8x1xf32>
    %190 = vector.broadcast %189 : vector<8x1xf32> to vector<8x128xf32>
    %191 = arith.subf %185, %190 : vector<8x128xf32>
    %c0_48 = arith.constant 0 : index
    %c0_49 = arith.constant 0 : index
    %192 = vector.load %arg7[%c0_48, %c0_49] : memref<8x128xf32, #tpu.memory_space<vmem>>, vector<8x128xf32>
    tpu.vector_store %arg7[%c0_48, %c0_49], %191 {strides = array<i32>} : memref<8x128xf32, #tpu.memory_space<vmem>>, vector<8x128xf32>,
    return
  }
  func.func @transform_0(%arg0: i32) -> (i32, i32) {
    %c0_i32 = arith.constant 0 : i32
    %c0_i32_0 = arith.constant 0 : i32
    %c0_i32_1 = arith.constant 0 : i32
    return %c0_i32, %c0_i32_0 : i32, i32
  }
  func.func @transform_1(%arg0: i32) -> (i32, i32) {
    %c0_i32 = arith.constant 0 : i32
    %c0_i32_0 = arith.constant 0 : i32
    %c0_i32_1 = arith.constant 0 : i32
    return %c0_i32, %c0_i32_0 : i32, i32
  }
  func.func @transform_2(%arg0: i32) -> (i32, i32) {
    %c0_i32 = arith.constant 0 : i32
    %c0_i32_0 = arith.constant 0 : i32
    %c0_i32_1 = arith.constant 0 : i32
    return %c0_i32, %c0_i32_0 : i32, i32
  }
  func.func @transform_3(%arg0: i32) -> (i32, i32) {
    %c0_i32 = arith.constant 0 : i32
    %c0_i32_0 = arith.constant 0 : i32
    %c0_i32_1 = arith.constant 0 : i32
    return %c0_i32, %c0_i32_0 : i32, i32
  }
  func.func @transform_4(%arg0: i32) -> (i32, i32) {
    %c0_i32 = arith.constant 0 : i32
    %c0_i32_0 = arith.constant 0 : i32
    %c0_i32_1 = arith.constant 0 : i32
    return %c0_i32, %c0_i32_0 : i32, i32
  }
  func.func @transform_5(%arg0: i32) -> (i32, i32) {
    %c0_i32 = arith.constant 0 : i32
    %c0_i32_0 = arith.constant 0 : i32
    %c0_i32_1 = arith.constant 0 : i32
    return %c0_i32, %c0_i32_0 : i32, i32
  }
  func.func @transform_6(%arg0: i32) -> (i32, i32) {
    %c0_i32 = arith.constant 0 : i32
    %c0_i32_0 = arith.constant 0 : i32
    %c0_i32_1 = arith.constant 0 : i32
    return %c0_i32, %c0_i32_0 : i32, i32
  }
}

</mosaic_0001>

<llo_original>
// kernel: tpu_custom_call.1
$region0: #{tpu_custom_call.1}
  #allocation0 [shape = 'u32[]', space=smem, size = 0x4, offset = 0x4, fixed_abs, tag = 'smem constant byte address 0x4 - core index']
  #allocation1 [shape = 'u32[144,128]{1,0:T(1,128)}', space=vmem, size = 0x12000, scoped, tag = 'internal scratch']
  %s0 = inlined_call_operand.vmem [shape: f32[64,16], index: 0, kind: input, shape index: {}]
  %s1 = inlined_call_operand.vmem [shape: f32[16,128], index: 1, kind: input, shape index: {}]
  %s2 = inlined_call_operand.vmem [shape: f32[32,128], index: 2, kind: input, shape index: {}]
  %s3 = inlined_call_operand.vmem [shape: f32[1,128], index: 3, kind: input, shape index: {}]
  %s4 = inlined_call_operand.vmem [shape: f32[32,128], index: 4, kind: input, shape index: {}]
  %s5 = inlined_call_operand.vmem [shape: f32[1,128], index: 5, kind: input, shape index: {}]
  %s6 = inlined_call_operand.hbm [shape: f32[8,128], index: 6, kind: output, shape index: {}]
  %s7 = sld [smem:[#allocation0]]
  $region34: #{tpu_custom_call.1} parent=0
    _
  %s9 = ssub.s32 1, %s7
  %s10 = scalar_select 0, %s9, %s7
  $region1: #{tpu_custom_call.1} parent=0
    #allocation2 [shape = 'u8[4096]{0}', space=vmem, size = 0x1000, scoped, tag = 'output window, operand 0, single buffered']
    #allocation3 [shape = 's32[1]{0}', space=sflag, size = 0x4, scoped, tag = 'scoped memory for tpu_custom_call.1']
    %11 = vsyncpa [#allocation3], 0
    // Predicated region
    $region2: #{tpu_custom_call.1} parent=1 // pred_check
      _
    $region3: #{tpu_custom_call.1} parent=1 // pred_check_branch
      %13 = sbr.rel (0) target = $region5
    $region4: #{tpu_custom_call.1} parent=1 // pred_region
      _
    $region5: #{tpu_custom_call.1} parent=1 // pred_fallthru
      _
    // Predicated region
    $region6: #{tpu_custom_call.1} parent=1 // pred_check
      _
    $region7: #{tpu_custom_call.1} parent=1 // pred_check_branch
      %15 = sbr.rel (0) target = $region9
    $region8: #{tpu_custom_call.1} parent=1 // pred_region
      _
    $region9: #{tpu_custom_call.1} parent=1 // pred_fallthru
      _
    // Predicated region
    $region10: #{tpu_custom_call.1} parent=1 // pred_check
      _
    $region11: #{tpu_custom_call.1} parent=1 // pred_check_branch
      %17 = sbr.rel (0) target = $region13
    $region12: #{tpu_custom_call.1} parent=1 // pred_region
      _
    $region13: #{tpu_custom_call.1} parent=1 // pred_fallthru
      _
    // Predicated region
    $region14: #{tpu_custom_call.1} parent=1 // pred_check
      _
    $region15: #{tpu_custom_call.1} parent=1 // pred_check_branch
      %19 = sbr.rel (0) target = $region17
    $region16: #{tpu_custom_call.1} parent=1 // pred_region
      _
    $region17: #{tpu_custom_call.1} parent=1 // pred_fallthru
      _
    // Predicated region
    $region18: #{tpu_custom_call.1} parent=1 // pred_check
      _
    $region19: #{tpu_custom_call.1} parent=1 // pred_check_branch
      %21 = sbr.rel (0) target = $region21
    $region20: #{tpu_custom_call.1} parent=1 // pred_region
      _
    $region21: #{tpu_custom_call.1} parent=1 // pred_fallthru
      _
    // Predicated region
    $region22: #{tpu_custom_call.1} parent=1 // pred_check
      _
    $region23: #{tpu_custom_call.1} parent=1 // pred_check_branch
      %23 = sbr.rel (0) target = $region25
    $region24: #{tpu_custom_call.1} parent=1 // pred_region
      _
    $region25: #{tpu_custom_call.1} parent=1 // pred_fallthru
      _
    %v24 = vld [vmem:[%s0] sm:$0xff]
    %v25 = vld [vmem:[%s0 + $0x8] sm:$0xff]
    %v26 = vld [vmem:[%s0 + $0x10] sm:$0xff]
    %v27 = vld [vmem:[%s0 + $0x18] sm:$0xff]
    %v28 = vld [vmem:[%s0 + $0x20] sm:$0xff]
    %v29 = vld [vmem:[%s0 + $0x28] sm:$0xff]
    %v30 = vld [vmem:[%s0 + $0x30] sm:$0xff]
    %v31 = vld [vmem:[%s0 + $0x38] sm:$0xff]
    %v32 = vld [vmem:[%s1] sm:$0xff]
    %v33 = vld [vmem:[%s1 + $0x8] sm:$0xff]
    %v34 = vld [vmem:[%s3] sm:$0x1]
    %v36 = vlaneseq
    %v37 = vshrl.u32 %v36, 7
    %v38 = vsub.s32 0, %v37
    %v39 = vrot.slane %v34, %v38
    %vm41 = vcmask 130048
    %v43 = vsel %vm41, %v24, 0
    %v46 = vsel %vm41, %v25, 0
    %v49 = vsel %vm41, %v26, 0
    %v52 = vsel %vm41, %v27, 0
    %v55 = vsel %vm41, %v28, 0
    %v58 = vsel %vm41, %v29, 0
    %v61 = vsel %vm41, %v30, 0
    %v64 = vsel %vm41, %v31, 0
    %66 = vmatprep.subr.mxu0 0.0
    %67 = vmatpush1.msra.mxu0 %v32
    %68 = vmatprep.subr.mxu0 0.0
    %69 = vmatpush1.msra.mxu0 %v33
    %70 = vmatprep.subr.mxu0 0.0
    %71 = vmatpush1.msra.mxu0 0.0
    %72 = vmatprep.subr.mxu0 0.0
    %73 = vmatpush1.msra.mxu0 0.0
    %74 = vmatprep.subr.mxu0 0.0
    %75 = vmatpush1.msra.mxu0 0.0
    %76 = vmatprep.subr.mxu0 0.0
    %77 = vmatpush1.msra.mxu0 0.0
    %78 = vmatprep.subr.mxu0 0.0
    %79 = vmatpush1.msra.mxu0 0.0
    %80 = vmatprep.subr.mxu0 0.0
    %81 = vmatpush1.msra.mxu0 0.0
    %82 = vmatprep.subr.mxu0 0.0
    %83 = vmatpush1.msra.mxu0 0.0
    %84 = vmatprep.subr.mxu0 0.0
    %85 = vmatpush1.msra.mxu0 0.0
    %86 = vmatprep.subr.mxu0 0.0
    %87 = vmatpush1.msra.mxu0 0.0
    %88 = vmatprep.subr.mxu0 0.0
    %89 = vmatpush1.msra.mxu0 0.0
    %90 = vmatprep.subr.mxu0 0.0
    %91 = vmatpush1.msra.mxu0 0.0
    %92 = vmatprep.subr.mxu0 0.0
    %93 = vmatpush1.msra.mxu0 0.0
    %94 = vmatprep.subr.mxu0 0.0
    %95 = vmatpush1.msra.mxu0 0.0
    %96 = vmatprep.subr.mxu0 0.0
    %97 = vmatpush1.msra.mxu0 0.0
    %98 = vmatprep.subr.mxu0 0.0
    %99 = vmatpush1.msra.mxu0 0.0
    %100 = vmatprep.subr.mxu0 0.0
    %101 = vmatpush1.msra.mxu0 0.0
    %102 = vmatprep.subr.mxu0 0.0
    %103 = vmatpush1.msra.mxu0 0.0
    %104 = vmatprep.subr.mxu0 0.0
    %105 = vmatpush1.msra.mxu0 0.0
    %106 = vmatprep.subr.mxu0 0.0
    %107 = vmatpush1.msra.mxu0 0.0
    %108 = vmatprep.subr.mxu0 0.0
    %109 = vmatpush1.msra.mxu0 0.0
    %110 = vmatprep.subr.mxu0 0.0
    %111 = vmatpush1.msra.mxu0 0.0
    %112 = vmatprep.subr.mxu0 0.0
    %113 = vmatpush1.msra.mxu0 0.0
    %114 = vmatprep.subr.mxu0 0.0
    %115 = vmatpush1.msra.mxu0 0.0
    %116 = vmatprep.subr.mxu0 0.0
    %117 = vmatpush1.msra.mxu0 0.0
    %118 = vmatprep.subr.mxu0 0.0
    %119 = vmatpush1.msra.mxu0 0.0
    %120 = vmatprep.subr.mxu0 0.0
    %121 = vmatpush1.msra.mxu0 0.0
    %122 = vmatprep.subr.mxu0 0.0
    %123 = vmatpush1.msra.mxu0 0.0
    %124 = vmatprep.subr.mxu0 0.0
    %125 = vmatpush1.msra.mxu0 0.0
    %126 = vmatprep.subr.mxu0 0.0
    %127 = vmatpush1.msra.mxu0 0.0
    %128 = vmatprep.subr.mxu0 0.0
    %129 = vmatpush1.msra.mxu0 0.0
    %130 = vmatprep.mubr.f32.mxu0 0.0
    %131 = vmatmul.mubr.f32.gmra.mrb[0].mxu0 %v43
    %v132 = vpop.f32.mrb[0].mxu0
    %v133 = vadd.f32 %v39, %v132
    %v134 = vpop.f32.mrb[0].mxu0
    %135 = vmatprep.mubr.f32.mxu0 0.0
    %136 = vmatmul.mubr.f32.gmra.mrb[0].mxu0 %v46
    %v137 = vpop.f32.mrb[0].mxu0
    %v138 = vadd.f32 %v39, %v137
    %v139 = vpop.f32.mrb[0].mxu0
    %140 = vmatprep.mubr.f32.mxu0 0.0
    %141 = vmatmul.mubr.f32.gmra.mrb[0].mxu0 %v49
    %v142 = vpop.f32.mrb[0].mxu0
    %v143 = vadd.f32 %v39, %v142
    %v144 = vpop.f32.mrb[0].mxu0
    %145 = vmatprep.mubr.f32.mxu0 0.0
    %146 = vmatmul.mubr.f32.gmra.mrb[0].mxu0 %v52
    %v147 = vpop.f32.mrb[0].mxu0
    %v148 = vadd.f32 %v39, %v147
    %v149 = vpop.f32.mrb[0].mxu0
    %150 = vmatprep.mubr.f32.mxu0 0.0
    %151 = vmatmul.mubr.f32.gmra.mrb[0].mxu0 %v55
    %v152 = vpop.f32.mrb[0].mxu0
    %v153 = vadd.f32 %v39, %v152
    %v154 = vpop.f32.mrb[0].mxu0
    %155 = vmatprep.mubr.f32.mxu0 0.0
    %156 = vmatmul.mubr.f32.gmra.mrb[0].mxu0 %v58
    %v157 = vpop.f32.mrb[0].mxu0
    %v158 = vadd.f32 %v39, %v157
    %v159 = vpop.f32.mrb[0].mxu0
    %160 = vmatprep.mubr.f32.mxu0 0.0
    %161 = vmatmul.mubr.f32.gmra.mrb[0].mxu0 %v61
    %v162 = vpop.f32.mrb[0].mxu0
    %v163 = vadd.f32 %v39, %v162
    %v164 = vpop.f32.mrb[0].mxu0
    %165 = vmatprep.mubr.f32.mxu0 0.0
    %166 = vmatmul.mubr.f32.gmra.mrb[0].mxu0 %v64
    %v167 = vpop.f32.mrb[0].mxu0
    %v168 = vadd.f32 %v39, %v167
    %v169 = vpop.f32.mrb[0].mxu0
    %170 = vdwg.mxu0
    %v171 = vld [vmem:[%s2] sm:$0xff]
    %v172 = vld [vmem:[%s2 + $0x8] sm:$0xff]
    %v173 = vld [vmem:[%s2 + $0x10] sm:$0xff]
    %v174 = vld [vmem:[%s2 + $0x18] sm:$0xff]
    %vm175 = vcmask 261120
    %v177 = vsel %vm175, 0.0, 0
    %179 = vmatprep.subr.mxu0 0.0
    %180 = vmatpush1.msra.mxu0 %v171
    %181 = vmatprep.subr.mxu0 0.0
    %182 = vmatpush1.msra.mxu0 %v172
    %183 = vmatprep.subr.mxu0 0.0
    %184 = vmatpush1.msra.mxu0 %v173
    %185 = vmatprep.subr.mxu0 0.0
    %186 = vmatpush1.msra.mxu0 %v174
    %187 = vmatprep.subr.mxu0 0.0
    %188 = vmatpush1.msra.mxu0 0.0
    %189 = vmatprep.subr.mxu0 0.0
    %190 = vmatpush1.msra.mxu0 0.0
    %191 = vmatprep.subr.mxu0 0.0
    %192 = vmatpush1.msra.mxu0 0.0
    %193 = vmatprep.subr.mxu0 0.0
    %194 = vmatpush1.msra.mxu0 0.0
    %195 = vmatprep.subr.mxu0 0.0
    %196 = vmatpush1.msra.mxu0 0.0
    %197 = vmatprep.subr.mxu0 0.0
    %198 = vmatpush1.msra.mxu0 0.0
    %199 = vmatprep.subr.mxu0 0.0
    %200 = vmatpush1.msra.mxu0 0.0
    %201 = vmatprep.subr.mxu0 0.0
    %202 = vmatpush1.msra.mxu0 0.0
    %203 = vmatprep.subr.mxu0 0.0
    %204 = vmatpush1.msra.mxu0 0.0
    %205 = vmatprep.subr.mxu0 0.0
    %206 = vmatpush1.msra.mxu0 0.0
    %207 = vmatprep.subr.mxu0 0.0
    %208 = vmatpush1.msra.mxu0 0.0
    %209 = vmatprep.subr.mxu0 0.0
    %210 = vmatpush1.msra.mxu0 0.0
    %211 = vmatprep.subr.mxu0 0.0
    %212 = vmatpush1.msra.mxu0 0.0
    %213 = vmatprep.subr.mxu0 0.0
    %214 = vmatpush1.msra.mxu0 0.0
    %215 = vmatprep.subr.mxu0 0.0
    %216 = vmatpush1.msra.mxu0 0.0
    %217 = vmatprep.subr.mxu0 0.0
    %218 = vmatpush1.msra.mxu0 0.0
    %219 = vmatprep.subr.mxu0 0.0
    %220 = vmatpush1.msra.mxu0 0.0
    %221 = vmatprep.subr.mxu0 0.0
    %222 = vmatpush1.msra.mxu0 0.0
    %223 = vmatprep.subr.mxu0 0.0
    %224 = vmatpush1.msra.mxu0 0.0
    %225 = vmatprep.subr.mxu0 0.0
    %226 = vmatpush1.msra.mxu0 0.0
    %227 = vmatprep.subr.mxu0 0.0
    %228 = vmatpush1.msra.mxu0 0.0
    %229 = vmatprep.subr.mxu0 0.0
    %230 = vmatpush1.msra.mxu0 0.0
    %231 = vmatprep.subr.mxu0 0.0
    %232 = vmatpush1.msra.mxu0 0.0
    %233 = vmatprep.subr.mxu0 0.0
    %234 = vmatpush1.msra.mxu0 0.0
    %235 = vmatprep.subr.mxu0 0.0
    %236 = vmatpush1.msra.mxu0 0.0
    %237 = vmatprep.subr.mxu0 0.0
    %238 = vmatpush1.msra.mxu0 0.0
    %239 = vmatprep.subr.mxu0 0.0
    %240 = vmatpush1.msra.mxu0 0.0
    %241 = vmatprep.subr.mxu0 0.0
    %242 = vmatpush1.msra.mxu0 0.0
    %243 = vmatprep.mubr.f32.mxu0 0.0
    %244 = vmatmul.mubr.f32.gmra.mrb[0].mxu0 %v177
    %v245 = vpop.f32.mrb[0].mxu0
    %v246 = vadd.f32 0.0, %v245
    %v247 = vpop.f32.mrb[0].mxu0
    %248 = vdwg.mxu0
    %v249 = vadd.f32 %v133, %v246
    %v250 = vxor.u32 %v249, 2147483648
    %v251 = vmul.f32 %v250, 1.442695
    %v252 = vpow.pop %v251
    %v253 = vadd.f32 %v252, 1.0
    %v254 = vrcp.pop %v253
    %v255 = vmul.f32 1.0, %v254
    %v256 = vmul.f32 %v255, 2.0
    %v257 = vsub.f32 %v256, 1.0
    %v258 = vmul.f32 %v255, 0.0
    %260 = vrot.lane.b32.xlu0 %v257, 64
    %v261 = vpop.permute.xlu0 %260
    %v263 = vmul.f32 %v255, %v261
    %265 = vrot.lane.b32.xlu0 %v263, 32
    %v266 = vpop.permute.xlu0 %265
    %v268 = vadd.f32 %v258, %v266
    %v269 = vtanh.pop %v268
    %271 = vrot.lane.b32.xlu0 %v269, 64
    %v272 = vpop.permute.xlu0 %271
    %v274 = vmul.f32 %v255, %v272
    %276 = vrot.lane.b32.xlu0 %v274, 32
    %v277 = vpop.permute.xlu0 %276
    %v278 = vsel %vm175, %v277, 0
    %280 = vmatprep.subr.mxu0 0.0
    %281 = vmatpush1.msra.mxu0 %v171
    %282 = vmatprep.subr.mxu0 0.0
    %283 = vmatpush1.msra.mxu0 %v172
    %284 = vmatprep.subr.mxu0 0.0
    %285 = vmatpush1.msra.mxu0 %v173
    %286 = vmatprep.subr.mxu0 0.0
    %287 = vmatpush1.msra.mxu0 %v174
    %288 = vmatprep.subr.mxu0 0.0
    %289 = vmatpush1.msra.mxu0 0.0
    %290 = vmatprep.subr.mxu0 0.0
    %291 = vmatpush1.msra.mxu0 0.0
    %292 = vmatprep.subr.mxu0 0.0
    %293 = vmatpush1.msra.mxu0 0.0
    %294 = vmatprep.subr.mxu0 0.0
    %295 = vmatpush1.msra.mxu0 0.0
    %296 = vmatprep.subr.mxu0 0.0
    %297 = vmatpush1.msra.mxu0 0.0
    %298 = vmatprep.subr.mxu0 0.0
    %299 = vmatpush1.msra.mxu0 0.0
    %300 = vmatprep.subr.mxu0 0.0
    %301 = vmatpush1.msra.mxu0 0.0
    %302 = vmatprep.subr.mxu0 0.0
    %303 = vmatpush1.msra.mxu0 0.0
    %304 = vmatprep.subr.mxu0 0.0
    %305 = vmatpush1.msra.mxu0 0.0
    %306 = vmatprep.subr.mxu0 0.0
    %307 = vmatpush1.msra.mxu0 0.0
    %308 = vmatprep.subr.mxu0 0.0
    %309 = vmatpush1.msra.mxu0 0.0
    %310 = vmatprep.subr.mxu0 0.0
    %311 = vmatpush1.msra.mxu0 0.0
    %312 = vmatprep.subr.mxu0 0.0
    %313 = vmatpush1.msra.mxu0 0.0
    %314 = vmatprep.subr.mxu0 0.0
    %315 = vmatpush1.msra.mxu0 0.0
    %316 = vmatprep.subr.mxu0 0.0
    %317 = vmatpush1.msra.mxu0 0.0
    %318 = vmatprep.subr.mxu0 0.0
    %319 = vmatpush1.msra.mxu0 0.0
    %320 = vmatprep.subr.mxu0 0.0
    %321 = vmatpush1.msra.mxu0 0.0
    %322 = vmatprep.subr.mxu0 0.0
    %323 = vmatpush1.msra.mxu0 0.0
    %324 = vmatprep.subr.mxu0 0.0
    %325 = vmatpush1.msra.mxu0 0.0
    %326 = vmatprep.subr.mxu0 0.0
    %327 = vmatpush1.msra.mxu0 0.0
    %328 = vmatprep.subr.mxu0 0.0
    %329 = vmatpush1.msra.mxu0 0.0
    %330 = vmatprep.subr.mxu0 0.0
    %331 = vmatpush1.msra.mxu0 0.0
    %332 = vmatprep.subr.mxu0 0.0
    %333 = vmatpush1.msra.mxu0 0.0
    %334 = vmatprep.subr.mxu0 0.0
    %335 = vmatpush1.msra.mxu0 0.0
    %336 = vmatprep.subr.mxu0 0.0
    %337 = vmatpush1.msra.mxu0 0.0
    %338 = vmatprep.subr.mxu0 0.0
    %339 = vmatpush1.msra.mxu0 0.0
    %340 = vmatprep.subr.mxu0 0.0
    %341 = vmatpush1.msra.mxu0 0.0
    %342 = vmatprep.subr.mxu0 0.0
    %343 = vmatpush1.msra.mxu0 0.0
    %344 = vmatprep.mubr.f32.mxu0 0.0
    %345 = vmatmul.mubr.f32.gmra.mrb[0].mxu0 %v278
    %v346 = vpop.f32.mrb[0].mxu0
    %v347 = vadd.f32 0.0, %v346
    %v348 = vpop.f32.mrb[0].mxu0
    %349 = vdwg.mxu0
    %v350 = vadd.f32 %v138, %v347
    %v351 = vxor.u32 %v350, 2147483648
    %v352 = vmul.f32 %v351, 1.442695
    %v353 = vpow.pop %v352
    %v354 = vadd.f32 %v353, 1.0
    %v355 = vrcp.pop %v354
    %v356 = vmul.f32 1.0, %v355
    %v357 = vmul.f32 %v356, 2.0
    %v358 = vsub.f32 %v357, 1.0
    %v359 = vmul.f32 %v356, %v268
    %361 = vrot.lane.b32.xlu0 %v358, 64
    %v362 = vpop.permute.xlu0 %361
    %v364 = vmul.f32 %v356, %v362
    %366 = vrot.lane.b32.xlu0 %v364, 32
    %v367 = vpop.permute.xlu0 %366
    %v369 = vadd.f32 %v359, %v367
    %v370 = vtanh.pop %v369
    %372 = vrot.lane.b32.xlu0 %v370, 64
    %v373 = vpop.permute.xlu0 %372
    %v375 = vmul.f32 %v356, %v373
    %377 = vrot.lane.b32.xlu0 %v375, 32
    %v378 = vpop.permute.xlu0 %377
    %v379 = vsel %vm175, %v378, 0
    %381 = vmatprep.subr.mxu0 0.0
    %382 = vmatpush1.msra.mxu0 %v171
    %383 = vmatprep.subr.mxu0 0.0
    %384 = vmatpush1.msra.mxu0 %v172
    %385 = vmatprep.subr.mxu0 0.0
    %386 = vmatpush1.msra.mxu0 %v173
    %387 = vmatprep.subr.mxu0 0.0
    %388 = vmatpush1.msra.mxu0 %v174
    %389 = vmatprep.subr.mxu0 0.0
    %390 = vmatpush1.msra.mxu0 0.0
    %391 = vmatprep.subr.mxu0 0.0
    %392 = vmatpush1.msra.mxu0 0.0
    %393 = vmatprep.subr.mxu0 0.0
    %394 = vmatpush1.msra.mxu0 0.0
    %395 = vmatprep.subr.mxu0 0.0
    %396 = vmatpush1.msra.mxu0 0.0
    %397 = vmatprep.subr.mxu0 0.0
    %398 = vmatpush1.msra.mxu0 0.0
    %399 = vmatprep.subr.mxu0 0.0
    %400 = vmatpush1.msra.mxu0 0.0
    %401 = vmatprep.subr.mxu0 0.0
    %402 = vmatpush1.msra.mxu0 0.0
    %403 = vmatprep.subr.mxu0 0.0
    %404 = vmatpush1.msra.mxu0 0.0
    %405 = vmatprep.subr.mxu0 0.0
    %406 = vmatpush1.msra.mxu0 0.0
    %407 = vmatprep.subr.mxu0 0.0
    %408 = vmatpush1.msra.mxu0 0.0
    %409 = vmatprep.subr.mxu0 0.0
    %410 = vmatpush1.msra.mxu0 0.0
    %411 = vmatprep.subr.mxu0 0.0
    %412 = vmatpush1.msra.mxu0 0.0
    %413 = vmatprep.subr.mxu0 0.0
    %414 = vmatpush1.msra.mxu0 0.0
    %415 = vmatprep.subr.mxu0 0.0
    %416 = vmatpush1.msra.mxu0 0.0
    %417 = vmatprep.subr.mxu0 0.0
    %418 = vmatpush1.msra.mxu0 0.0
    %419 = vmatprep.subr.mxu0 0.0
    %420 = vmatpush1.msra.mxu0 0.0
    %421 = vmatprep.subr.mxu0 0.0
    %422 = vmatpush1.msra.mxu0 0.0
    %423 = vmatprep.subr.mxu0 0.0
    %424 = vmatpush1.msra.mxu0 0.0
    %425 = vmatprep.subr.mxu0 0.0
    %426 = vmatpush1.msra.mxu0 0.0
    %427 = vmatprep.subr.mxu0 0.0
    %428 = vmatpush1.msra.mxu0 0.0
    %429 = vmatprep.subr.mxu0 0.0
    %430 = vmatpush1.msra.mxu0 0.0
    %431 = vmatprep.subr.mxu0 0.0
    %432 = vmatpush1.msra.mxu0 0.0
    %433 = vmatprep.subr.mxu0 0.0
    %434 = vmatpush1.msra.mxu0 0.0
    %435 = vmatprep.subr.mxu0 0.0
    %436 = vmatpush1.msra.mxu0 0.0
    %437 = vmatprep.subr.mxu0 0.0
    %438 = vmatpush1.msra.mxu0 0.0
    %439 = vmatprep.subr.mxu0 0.0
    %440 = vmatpush1.msra.mxu0 0.0
    %441 = vmatprep.subr.mxu0 0.0
    %442 = vmatpush1.msra.mxu0 0.0
    %443 = vmatprep.subr.mxu0 0.0
    %444 = vmatpush1.msra.mxu0 0.0
    %445 = vmatprep.mubr.f32.mxu0 0.0
    %446 = vmatmul.mubr.f32.gmra.mrb[0].mxu0 %v379
    %v447 = vpop.f32.mrb[0].mxu0
    %v448 = vadd.f32 0.0, %v447
    %v449 = vpop.f32.mrb[0].mxu0
    %450 = vdwg.mxu0
    %v451 = vadd.f32 %v143, %v448
    %v452 = vxor.u32 %v451, 2147483648
    %v453 = vmul.f32 %v452, 1.442695
    %v454 = vpow.pop %v453
    %v455 = vadd.f32 %v454, 1.0
    %v456 = vrcp.pop %v455
    %v457 = vmul.f32 1.0, %v456
    %v458 = vmul.f32 %v457, 2.0
    %v459 = vsub.f32 %v458, 1.0
    %v460 = vmul.f32 %v457, %v369
    %462 = vrot.lane.b32.xlu0 %v459, 64
    %v463 = vpop.permute.xlu0 %462
    %v465 = vmul.f32 %v457, %v463
    %467 = vrot.lane.b32.xlu0 %v465, 32
    %v468 = vpop.permute.xlu0 %467
    %v470 = vadd.f32 %v460, %v468
    %v471 = vtanh.pop %v470
    %473 = vrot.lane.b32.xlu0 %v471, 64
    %v474 = vpop.permute.xlu0 %473
    %v476 = vmul.f32 %v457, %v474
    %478 = vrot.lane.b32.xlu0 %v476, 32
    %v479 = vpop.permute.xlu0 %478
    %v480 = vsel %vm175, %v479, 0
    %482 = vmatprep.subr.mxu0 0.0
    %483 = vmatpush1.msra.mxu0 %v171
    %484 = vmatprep.subr.mxu0 0.0
    %485 = vmatpush1.msra.mxu0 %v172
    %486 = vmatprep.subr.mxu0 0.0
    %487 = vmatpush1.msra.mxu0 %v173
    %488 = vmatprep.subr.mxu0 0.0
    %489 = vmatpush1.msra.mxu0 %v174
    %490 = vmatprep.subr.mxu0 0.0
    %491 = vmatpush1.msra.mxu0 0.0
    %492 = vmatprep.subr.mxu0 0.0
    %493 = vmatpush1.msra.mxu0 0.0
    %494 = vmatprep.subr.mxu0 0.0
    %495 = vmatpush1.msra.mxu0 0.0
    %496 = vmatprep.subr.mxu0 0.0
    %497 = vmatpush1.msra.mxu0 0.0
    %498 = vmatprep.subr.mxu0 0.0
    %499 = vmatpush1.msra.mxu0 0.0
    %500 = vmatprep.subr.mxu0 0.0
    %501 = vmatpush1.msra.mxu0 0.0
    %502 = vmatprep.subr.mxu0 0.0
    %503 = vmatpush1.msra.mxu0 0.0
    %504 = vmatprep.subr.mxu0 0.0
    %505 = vmatpush1.msra.mxu0 0.0
    %506 = vmatprep.subr.mxu0 0.0
    %507 = vmatpush1.msra.mxu0 0.0
    %508 = vmatprep.subr.mxu0 0.0
    %509 = vmatpush1.msra.mxu0 0.0
    %510 = vmatprep.subr.mxu0 0.0
    %511 = vmatpush1.msra.mxu0 0.0
    %512 = vmatprep.subr.mxu0 0.0
    %513 = vmatpush1.msra.mxu0 0.0
    %514 = vmatprep.subr.mxu0 0.0
    %515 = vmatpush1.msra.mxu0 0.0
    %516 = vmatprep.subr.mxu0 0.0
    %517 = vmatpush1.msra.mxu0 0.0
    %518 = vmatprep.subr.mxu0 0.0
    %519 = vmatpush1.msra.mxu0 0.0
    %520 = vmatprep.subr.mxu0 0.0
    %521 = vmatpush1.msra.mxu0 0.0
    %522 = vmatprep.subr.mxu0 0.0
    %523 = vmatpush1.msra.mxu0 0.0
    %524 = vmatprep.subr.mxu0 0.0
    %525 = vmatpush1.msra.mxu0 0.0
    %526 = vmatprep.subr.mxu0 0.0
    %527 = vmatpush1.msra.mxu0 0.0
    %528 = vmatprep.subr.mxu0 0.0
    %529 = vmatpush1.msra.mxu0 0.0
    %530 = vmatprep.subr.mxu0 0.0
    %531 = vmatpush1.msra.mxu0 0.0
    %532 = vmatprep.subr.mxu0 0.0
    %533 = vmatpush1.msra.mxu0 0.0
    %534 = vmatprep.subr.mxu0 0.0
    %535 = vmatpush1.msra.mxu0 0.0
    %536 = vmatprep.subr.mxu0 0.0
    %537 = vmatpush1.msra.mxu0 0.0
    %538 = vmatprep.subr.mxu0 0.0
    %539 = vmatpush1.msra.mxu0 0.0
    %540 = vmatprep.subr.mxu0 0.0
    %541 = vmatpush1.msra.mxu0 0.0
    %542 = vmatprep.subr.mxu0 0.0
    %543 = vmatpush1.msra.mxu0 0.0
    %544 = vmatprep.subr.mxu0 0.0
    %545 = vmatpush1.msra.mxu0 0.0
    %546 = vmatprep.mubr.f32.mxu0 0.0
    %547 = vmatmul.mubr.f32.gmra.mrb[0].mxu0 %v480
    %v548 = vpop.f32.mrb[0].mxu0
    %v549 = vadd.f32 0.0, %v548
    %v550 = vpop.f32.mrb[0].mxu0
    %551 = vdwg.mxu0
    %v552 = vadd.f32 %v148, %v549
    %v553 = vxor.u32 %v552, 2147483648
    %v554 = vmul.f32 %v553, 1.442695
    %v555 = vpow.pop %v554
    %v556 = vadd.f32 %v555, 1.0
    %v557 = vrcp.pop %v556
    %v558 = vmul.f32 1.0, %v557
    %v559 = vmul.f32 %v558, 2.0
    %v560 = vsub.f32 %v559, 1.0
    %v561 = vmul.f32 %v558, %v470
    %563 = vrot.lane.b32.xlu0 %v560, 64
    %v564 = vpop.permute.xlu0 %563
    %v566 = vmul.f32 %v558, %v564
    %568 = vrot.lane.b32.xlu0 %v566, 32
    %v569 = vpop.permute.xlu0 %568
    %v571 = vadd.f32 %v561, %v569
    %v572 = vtanh.pop %v571
    %574 = vrot.lane.b32.xlu0 %v572, 64
    %v575 = vpop.permute.xlu0 %574
    %v577 = vmul.f32 %v558, %v575
    %579 = vrot.lane.b32.xlu0 %v577, 32
    %v580 = vpop.permute.xlu0 %579
    %v581 = vsel %vm175, %v580, 0
    %583 = vmatprep.subr.mxu0 0.0
    %584 = vmatpush1.msra.mxu0 %v171
    %585 = vmatprep.subr.mxu0 0.0
    %586 = vmatpush1.msra.mxu0 %v172
    %587 = vmatprep.subr.mxu0 0.0
    %588 = vmatpush1.msra.mxu0 %v173
    %589 = vmatprep.subr.mxu0 0.0
    %590 = vmatpush1.msra.mxu0 %v174
    %591 = vmatprep.subr.mxu0 0.0
    %592 = vmatpush1.msra.mxu0 0.0
    %593 = vmatprep.subr.mxu0 0.0
    %594 = vmatpush1.msra.mxu0 0.0
    %595 = vmatprep.subr.mxu0 0.0
    %596 = vmatpush1.msra.mxu0 0.0
    %597 = vmatprep.subr.mxu0 0.0
    %598 = vmatpush1.msra.mxu0 0.0
    %599 = vmatprep.subr.mxu0 0.0
    %600 = vmatpush1.msra.mxu0 0.0
    %601 = vmatprep.subr.mxu0 0.0
    %602 = vmatpush1.msra.mxu0 0.0
    %603 = vmatprep.subr.mxu0 0.0
    %604 = vmatpush1.msra.mxu0 0.0
    %605 = vmatprep.subr.mxu0 0.0
    %606 = vmatpush1.msra.mxu0 0.0
    %607 = vmatprep.subr.mxu0 0.0
    %608 = vmatpush1.msra.mxu0 0.0
    %609 = vmatprep.subr.mxu0 0.0
    %610 = vmatpush1.msra.mxu0 0.0
    %611 = vmatprep.subr.mxu0 0.0
    %612 = vmatpush1.msra.mxu0 0.0
    %613 = vmatprep.subr.mxu0 0.0
    %614 = vmatpush1.msra.mxu0 0.0
    %615 = vmatprep.subr.mxu0 0.0
    %616 = vmatpush1.msra.mxu0 0.0
    %617 = vmatprep.subr.mxu0 0.0
    %618 = vmatpush1.msra.mxu0 0.0
    %619 = vmatprep.subr.mxu0 0.0
    %620 = vmatpush1.msra.mxu0 0.0
    %621 = vmatprep.subr.mxu0 0.0
    %622 = vmatpush1.msra.mxu0 0.0
    %623 = vmatprep.subr.mxu0 0.0
    %624 = vmatpush1.msra.mxu0 0.0
    %625 = vmatprep.subr.mxu0 0.0
    %626 = vmatpush1.msra.mxu0 0.0
    %627 = vmatprep.subr.mxu0 0.0
    %628 = vmatpush1.msra.mxu0 0.0
    %629 = vmatprep.subr.mxu0 0.0
    %630 = vmatpush1.msra.mxu0 0.0
    %631 = vmatprep.subr.mxu0 0.0
    %632 = vmatpush1.msra.mxu0 0.0
    %633 = vmatprep.subr.mxu0 0.0
    %634 = vmatpush1.msra.mxu0 0.0
    %635 = vmatprep.subr.mxu0 0.0
    %636 = vmatpush1.msra.mxu0 0.0
    %637 = vmatprep.subr.mxu0 0.0
    %638 = vmatpush1.msra.mxu0 0.0
    %639 = vmatprep.subr.mxu0 0.0
    %640 = vmatpush1.msra.mxu0 0.0
    %641 = vmatprep.subr.mxu0 0.0
    %642 = vmatpush1.msra.mxu0 0.0
    %643 = vmatprep.subr.mxu0 0.0
    %644 = vmatpush1.msra.mxu0 0.0
    %645 = vmatprep.subr.mxu0 0.0
    %646 = vmatpush1.msra.mxu0 0.0
    %647 = vmatprep.mubr.f32.mxu0 0.0
    %648 = vmatmul.mubr.f32.gmra.mrb[0].mxu0 %v581
    %v649 = vpop.f32.mrb[0].mxu0
    %v650 = vadd.f32 0.0, %v649
    %v651 = vpop.f32.mrb[0].mxu0
    %652 = vdwg.mxu0
    %v653 = vadd.f32 %v153, %v650
    %v654 = vxor.u32 %v653, 2147483648
    %v655 = vmul.f32 %v654, 1.442695
    %v656 = vpow.pop %v655
    %v657 = vadd.f32 %v656, 1.0
    %v658 = vrcp.pop %v657
    %v659 = vmul.f32 1.0, %v658
    %v660 = vmul.f32 %v659, 2.0
    %v661 = vsub.f32 %v660, 1.0
    %v662 = vmul.f32 %v659, %v571
    %664 = vrot.lane.b32.xlu0 %v661, 64
    %v665 = vpop.permute.xlu0 %664
    %v667 = vmul.f32 %v659, %v665
    %669 = vrot.lane.b32.xlu0 %v667, 32
    %v670 = vpop.permute.xlu0 %669
    %v672 = vadd.f32 %v662, %v670
    %v673 = vtanh.pop %v672
    %675 = vrot.lane.b32.xlu0 %v673, 64
    %v676 = vpop.permute.xlu0 %675
    %v678 = vmul.f32 %v659, %v676
    %680 = vrot.lane.b32.xlu0 %v678, 32
    %v681 = vpop.permute.xlu0 %680
    %v682 = vsel %vm175, %v681, 0
    %684 = vmatprep.subr.mxu0 0.0
    %685 = vmatpush1.msra.mxu0 %v171
    %686 = vmatprep.subr.mxu0 0.0
    %687 = vmatpush1.msra.mxu0 %v172
    %688 = vmatprep.subr.mxu0 0.0
    %689 = vmatpush1.msra.mxu0 %v173
    %690 = vmatprep.subr.mxu0 0.0
    %691 = vmatpush1.msra.mxu0 %v174
    %692 = vmatprep.subr.mxu0 0.0
    %693 = vmatpush1.msra.mxu0 0.0
    %694 = vmatprep.subr.mxu0 0.0
    %695 = vmatpush1.msra.mxu0 0.0
    %696 = vmatprep.subr.mxu0 0.0
    %697 = vmatpush1.msra.mxu0 0.0
    %698 = vmatprep.subr.mxu0 0.0
    %699 = vmatpush1.msra.mxu0 0.0
    %700 = vmatprep.subr.mxu0 0.0
    %701 = vmatpush1.msra.mxu0 0.0
    %702 = vmatprep.subr.mxu0 0.0
    %703 = vmatpush1.msra.mxu0 0.0
    %704 = vmatprep.subr.mxu0 0.0
    %705 = vmatpush1.msra.mxu0 0.0
    %706 = vmatprep.subr.mxu0 0.0
    %707 = vmatpush1.msra.mxu0 0.0
    %708 = vmatprep.subr.mxu0 0.0
    %709 = vmatpush1.msra.mxu0 0.0
    %710 = vmatprep.subr.mxu0 0.0
    %711 = vmatpush1.msra.mxu0 0.0
    %712 = vmatprep.subr.mxu0 0.0
    %713 = vmatpush1.msra.mxu0 0.0
    %714 = vmatprep.subr.mxu0 0.0
    %715 = vmatpush1.msra.mxu0 0.0
    %716 = vmatprep.subr.mxu0 0.0
    %717 = vmatpush1.msra.mxu0 0.0
    %718 = vmatprep.subr.mxu0 0.0
    %719 = vmatpush1.msra.mxu0 0.0
    %720 = vmatprep.subr.mxu0 0.0
    %721 = vmatpush1.msra.mxu0 0.0
    %722 = vmatprep.subr.mxu0 0.0
    %723 = vmatpush1.msra.mxu0 0.0
    %724 = vmatprep.subr.mxu0 0.0
    %725 = vmatpush1.msra.mxu0 0.0
    %726 = vmatprep.subr.mxu0 0.0
    %727 = vmatpush1.msra.mxu0 0.0
    %728 = vmatprep.subr.mxu0 0.0
    %729 = vmatpush1.msra.mxu0 0.0
    %730 = vmatprep.subr.mxu0 0.0
    %731 = vmatpush1.msra.mxu0 0.0
    %732 = vmatprep.subr.mxu0 0.0
    %733 = vmatpush1.msra.mxu0 0.0
    %734 = vmatprep.subr.mxu0 0.0
    %735 = vmatpush1.msra.mxu0 0.0
    %736 = vmatprep.subr.mxu0 0.0
    %737 = vmatpush1.msra.mxu0 0.0
    %738 = vmatprep.subr.mxu0 0.0
    %739 = vmatpush1.msra.mxu0 0.0
    %740 = vmatprep.subr.mxu0 0.0
    %741 = vmatpush1.msra.mxu0 0.0
    %742 = vmatprep.subr.mxu0 0.0
    %743 = vmatpush1.msra.mxu0 0.0
    %744 = vmatprep.subr.mxu0 0.0
    %745 = vmatpush1.msra.mxu0 0.0
    %746 = vmatprep.subr.mxu0 0.0
    %747 = vmatpush1.msra.mxu0 0.0
    %748 = vmatprep.mubr.f32.mxu0 0.0
    %749 = vmatmul.mubr.f32.gmra.mrb[0].mxu0 %v682
    %v750 = vpop.f32.mrb[0].mxu0
    %v751 = vadd.f32 0.0, %v750
    %v752 = vpop.f32.mrb[0].mxu0
    %753 = vdwg.mxu0
    %v754 = vadd.f32 %v158, %v751
    %v755 = vxor.u32 %v754, 2147483648
    %v756 = vmul.f32 %v755, 1.442695
    %v757 = vpow.pop %v756
    %v758 = vadd.f32 %v757, 1.0
    %v759 = vrcp.pop %v758
    %v760 = vmul.f32 1.0, %v759
    %v761 = vmul.f32 %v760, 2.0
    %v762 = vsub.f32 %v761, 1.0
    %v763 = vmul.f32 %v760, %v672
    %765 = vrot.lane.b32.xlu0 %v762, 64
    %v766 = vpop.permute.xlu0 %765
    %v768 = vmul.f32 %v760, %v766
    %770 = vrot.lane.b32.xlu0 %v768, 32
    %v771 = vpop.permute.xlu0 %770
    %v773 = vadd.f32 %v763, %v771
    %v774 = vtanh.pop %v773
    %776 = vrot.lane.b32.xlu0 %v774, 64
    %v777 = vpop.permute.xlu0 %776
    %v779 = vmul.f32 %v760, %v777
    %781 = vrot.lane.b32.xlu0 %v779, 32
    %v782 = vpop.permute.xlu0 %781
    %v783 = vsel %vm175, %v782, 0
    %785 = vmatprep.subr.mxu0 0.0
    %786 = vmatpush1.msra.mxu0 %v171
    %787 = vmatprep.subr.mxu0 0.0
    %788 = vmatpush1.msra.mxu0 %v172
    %789 = vmatprep.subr.mxu0 0.0
    %790 = vmatpush1.msra.mxu0 %v173
    %791 = vmatprep.subr.mxu0 0.0
    %792 = vmatpush1.msra.mxu0 %v174
    %793 = vmatprep.subr.mxu0 0.0
    %794 = vmatpush1.msra.mxu0 0.0
    %795 = vmatprep.subr.mxu0 0.0
    %796 = vmatpush1.msra.mxu0 0.0
    %797 = vmatprep.subr.mxu0 0.0
    %798 = vmatpush1.msra.mxu0 0.0
    %799 = vmatprep.subr.mxu0 0.0
    %800 = vmatpush1.msra.mxu0 0.0
    %801 = vmatprep.subr.mxu0 0.0
    %802 = vmatpush1.msra.mxu0 0.0
    %803 = vmatprep.subr.mxu0 0.0
    %804 = vmatpush1.msra.mxu0 0.0
    %805 = vmatprep.subr.mxu0 0.0
    %806 = vmatpush1.msra.mxu0 0.0
    %807 = vmatprep.subr.mxu0 0.0
    %808 = vmatpush1.msra.mxu0 0.0
    %809 = vmatprep.subr.mxu0 0.0
    %810 = vmatpush1.msra.mxu0 0.0
    %811 = vmatprep.subr.mxu0 0.0
    %812 = vmatpush1.msra.mxu0 0.0
    %813 = vmatprep.subr.mxu0 0.0
    %814 = vmatpush1.msra.mxu0 0.0
    %815 = vmatprep.subr.mxu0 0.0
    %816 = vmatpush1.msra.mxu0 0.0
    %817 = vmatprep.subr.mxu0 0.0
    %818 = vmatpush1.msra.mxu0 0.0
    %819 = vmatprep.subr.mxu0 0.0
    %820 = vmatpush1.msra.mxu0 0.0
    %821 = vmatprep.subr.mxu0 0.0
    %822 = vmatpush1.msra.mxu0 0.0
    %823 = vmatprep.subr.mxu0 0.0
    %824 = vmatpush1.msra.mxu0 0.0
    %825 = vmatprep.subr.mxu0 0.0
    %826 = vmatpush1.msra.mxu0 0.0
    %827 = vmatprep.subr.mxu0 0.0
    %828 = vmatpush1.msra.mxu0 0.0
    %829 = vmatprep.subr.mxu0 0.0
    %830 = vmatpush1.msra.mxu0 0.0
    %831 = vmatprep.subr.mxu0 0.0
    %832 = vmatpush1.msra.mxu0 0.0
    %833 = vmatprep.subr.mxu0 0.0
    %834 = vmatpush1.msra.mxu0 0.0
    %835 = vmatprep.subr.mxu0 0.0
    %836 = vmatpush1.msra.mxu0 0.0
    %837 = vmatprep.subr.mxu0 0.0
    %838 = vmatpush1.msra.mxu0 0.0
    %839 = vmatprep.subr.mxu0 0.0
    %840 = vmatpush1.msra.mxu0 0.0
    %841 = vmatprep.subr.mxu0 0.0
    %842 = vmatpush1.msra.mxu0 0.0
    %843 = vmatprep.subr.mxu0 0.0
    %844 = vmatpush1.msra.mxu0 0.0
    %845 = vmatprep.subr.mxu0 0.0
    %846 = vmatpush1.msra.mxu0 0.0
    %847 = vmatprep.subr.mxu0 0.0
    %848 = vmatpush1.msra.mxu0 0.0
    %849 = vmatprep.mubr.f32.mxu0 0.0
    %850 = vmatmul.mubr.f32.gmra.mrb[0].mxu0 %v783
    %v851 = vpop.f32.mrb[0].mxu0
    %v852 = vadd.f32 0.0, %v851
    %v853 = vpop.f32.mrb[0].mxu0
    %854 = vdwg.mxu0
    %v855 = vadd.f32 %v163, %v852
    %v856 = vxor.u32 %v855, 2147483648
    %v857 = vmul.f32 %v856, 1.442695
    %v858 = vpow.pop %v857
    %v859 = vadd.f32 %v858, 1.0
    %v860 = vrcp.pop %v859
    %v861 = vmul.f32 1.0, %v860
    %v862 = vmul.f32 %v861, 2.0
    %v863 = vsub.f32 %v862, 1.0
    %v864 = vmul.f32 %v861, %v773
    %866 = vrot.lane.b32.xlu0 %v863, 64
    %v867 = vpop.permute.xlu0 %866
    %v869 = vmul.f32 %v861, %v867
    %871 = vrot.lane.b32.xlu0 %v869, 32
    %v872 = vpop.permute.xlu0 %871
    %v874 = vadd.f32 %v864, %v872
    %v875 = vtanh.pop %v874
    %877 = vrot.lane.b32.xlu0 %v875, 64
    %v878 = vpop.permute.xlu0 %877
    %v880 = vmul.f32 %v861, %v878
    %882 = vrot.lane.b32.xlu0 %v880, 32
    %v883 = vpop.permute.xlu0 %882
    %v884 = vsel %vm175, %v883, 0
    %886 = vmatprep.subr.mxu0 0.0
    %887 = vmatpush1.msra.mxu0 %v171
    %888 = vmatprep.subr.mxu0 0.0
    %889 = vmatpush1.msra.mxu0 %v172
    %890 = vmatprep.subr.mxu0 0.0
    %891 = vmatpush1.msra.mxu0 %v173
    %892 = vmatprep.subr.mxu0 0.0
    %893 = vmatpush1.msra.mxu0 %v174
    %894 = vmatprep.subr.mxu0 0.0
    %895 = vmatpush1.msra.mxu0 0.0
    %896 = vmatprep.subr.mxu0 0.0
    %897 = vmatpush1.msra.mxu0 0.0
    %898 = vmatprep.subr.mxu0 0.0
    %899 = vmatpush1.msra.mxu0 0.0
    %900 = vmatprep.subr.mxu0 0.0
    %901 = vmatpush1.msra.mxu0 0.0
    %902 = vmatprep.subr.mxu0 0.0
    %903 = vmatpush1.msra.mxu0 0.0
    %904 = vmatprep.subr.mxu0 0.0
    %905 = vmatpush1.msra.mxu0 0.0
    %906 = vmatprep.subr.mxu0 0.0
    %907 = vmatpush1.msra.mxu0 0.0
    %908 = vmatprep.subr.mxu0 0.0
    %909 = vmatpush1.msra.mxu0 0.0
    %910 = vmatprep.subr.mxu0 0.0
    %911 = vmatpush1.msra.mxu0 0.0
    %912 = vmatprep.subr.mxu0 0.0
    %913 = vmatpush1.msra.mxu0 0.0
    %914 = vmatprep.subr.mxu0 0.0
    %915 = vmatpush1.msra.mxu0 0.0
    %916 = vmatprep.subr.mxu0 0.0
    %917 = vmatpush1.msra.mxu0 0.0
    %918 = vmatprep.subr.mxu0 0.0
    %919 = vmatpush1.msra.mxu0 0.0
    %920 = vmatprep.subr.mxu0 0.0
    %921 = vmatpush1.msra.mxu0 0.0
    %922 = vmatprep.subr.mxu0 0.0
    %923 = vmatpush1.msra.mxu0 0.0
    %924 = vmatprep.subr.mxu0 0.0
    %925 = vmatpush1.msra.mxu0 0.0
    %926 = vmatprep.subr.mxu0 0.0
    %927 = vmatpush1.msra.mxu0 0.0
    %928 = vmatprep.subr.mxu0 0.0
    %929 = vmatpush1.msra.mxu0 0.0
    %930 = vmatprep.subr.mxu0 0.0
    %931 = vmatpush1.msra.mxu0 0.0
    %932 = vmatprep.subr.mxu0 0.0
    %933 = vmatpush1.msra.mxu0 0.0
    %934 = vmatprep.subr.mxu0 0.0
    %935 = vmatpush1.msra.mxu0 0.0
    %936 = vmatprep.subr.mxu0 0.0
    %937 = vmatpush1.msra.mxu0 0.0
    %938 = vmatprep.subr.mxu0 0.0
    %939 = vmatpush1.msra.mxu0 0.0
    %940 = vmatprep.subr.mxu0 0.0
    %941 = vmatpush1.msra.mxu0 0.0
    %942 = vmatprep.subr.mxu0 0.0
    %943 = vmatpush1.msra.mxu0 0.0
    %944 = vmatprep.subr.mxu0 0.0
    %945 = vmatpush1.msra.mxu0 0.0
    %946 = vmatprep.subr.mxu0 0.0
    %947 = vmatpush1.msra.mxu0 0.0
    %948 = vmatprep.subr.mxu0 0.0
    %949 = vmatpush1.msra.mxu0 0.0
    %950 = vmatprep.mubr.f32.mxu0 0.0
    %951 = vmatmul.mubr.f32.gmra.mrb[0].mxu0 %v884
    %v952 = vpop.f32.mrb[0].mxu0
    %v953 = vadd.f32 0.0, %v952
    %v954 = vpop.f32.mrb[0].mxu0
    %955 = vdwg.mxu0
    %v956 = vadd.f32 %v168, %v953
    %v957 = vxor.u32 %v956, 2147483648
    %v958 = vmul.f32 %v957, 1.442695
    %v959 = vpow.pop %v958
    %v960 = vadd.f32 %v959, 1.0
    %v961 = vrcp.pop %v960
    %v962 = vmul.f32 1.0, %v961
    %v963 = vmul.f32 %v962, 2.0
    %v964 = vsub.f32 %v963, 1.0
    %v965 = vmul.f32 %v962, %v874
    %967 = vrot.lane.b32.xlu0 %v964, 64
    %v968 = vpop.permute.xlu0 %967
    %v970 = vmul.f32 %v962, %v968
    %972 = vrot.lane.b32.xlu0 %v970, 32
    %v973 = vpop.permute.xlu0 %972
    %v975 = vadd.f32 %v965, %v973
    %v976 = vtanh.pop %v975
    %978 = vrot.lane.b32.xlu0 %v976, 64
    %v979 = vpop.permute.xlu0 %978
    %v981 = vmul.f32 %v962, %v979
    %v982 = vld [vmem:[%s4] sm:$0xff]
    %v983 = vld [vmem:[%s4 + $0x8] sm:$0xff]
    %v984 = vld [vmem:[%s4 + $0x10] sm:$0xff]
    %v985 = vld [vmem:[%s4 + $0x18] sm:$0xff]
    %v986 = vld [vmem:[%s5] sm:$0x1]
    %v988 = vlaneseq
    %v989 = vshrl.u32 %v988, 7
    %v990 = vsub.s32 0, %v989
    %v991 = vrot.slane %v986, %v990
    %994 = vrot.lane.b32.xlu0 %v981, 32
    %v995 = vpop.permute.xlu0 %994
    %v996 = vsel %vm175, %v995, 0
    %998 = vmatprep.subr.mxu0 0.0
    %999 = vmatpush1.msra.mxu0 %v982
    %1000 = vmatprep.subr.mxu0 0.0
    %1001 = vmatpush1.msra.mxu0 %v983
    %1002 = vmatprep.subr.mxu0 0.0
    %1003 = vmatpush1.msra.mxu0 %v984
    %1004 = vmatprep.subr.mxu0 0.0
    %1005 = vmatpush1.msra.mxu0 %v985
    %1006 = vmatprep.subr.mxu0 0.0
    %1007 = vmatpush1.msra.mxu0 0.0
    %1008 = vmatprep.subr.mxu0 0.0
    %1009 = vmatpush1.msra.mxu0 0.0
    %1010 = vmatprep.subr.mxu0 0.0
    %1011 = vmatpush1.msra.mxu0 0.0
    %1012 = vmatprep.subr.mxu0 0.0
    %1013 = vmatpush1.msra.mxu0 0.0
    %1014 = vmatprep.subr.mxu0 0.0
    %1015 = vmatpush1.msra.mxu0 0.0
    %1016 = vmatprep.subr.mxu0 0.0
    %1017 = vmatpush1.msra.mxu0 0.0
    %1018 = vmatprep.subr.mxu0 0.0
    %1019 = vmatpush1.msra.mxu0 0.0
    %1020 = vmatprep.subr.mxu0 0.0
    %1021 = vmatpush1.msra.mxu0 0.0
    %1022 = vmatprep.subr.mxu0 0.0
    %1023 = vmatpush1.msra.mxu0 0.0
    %1024 = vmatprep.subr.mxu0 0.0
    %1025 = vmatpush1.msra.mxu0 0.0
    %1026 = vmatprep.subr.mxu0 0.0
    %1027 = vmatpush1.msra.mxu0 0.0
    %1028 = vmatprep.subr.mxu0 0.0
    %1029 = vmatpush1.msra.mxu0 0.0
    %1030 = vmatprep.subr.mxu0 0.0
    %1031 = vmatpush1.msra.mxu0 0.0
    %1032 = vmatprep.subr.mxu0 0.0
    %1033 = vmatpush1.msra.mxu0 0.0
    %1034 = vmatprep.subr.mxu0 0.0
    %1035 = vmatpush1.msra.mxu0 0.0
    %1036 = vmatprep.subr.mxu0 0.0
    %1037 = vmatpush1.msra.mxu0 0.0
    %1038 = vmatprep.subr.mxu0 0.0
    %1039 = vmatpush1.msra.mxu0 0.0
    %1040 = vmatprep.subr.mxu0 0.0
    %1041 = vmatpush1.msra.mxu0 0.0
    %1042 = vmatprep.subr.mxu0 0.0
    %1043 = vmatpush1.msra.mxu0 0.0
    %1044 = vmatprep.subr.mxu0 0.0
    %1045 = vmatpush1.msra.mxu0 0.0
    %1046 = vmatprep.subr.mxu0 0.0
    %1047 = vmatpush1.msra.mxu0 0.0
    %1048 = vmatprep.subr.mxu0 0.0
    %1049 = vmatpush1.msra.mxu0 0.0
    %1050 = vmatprep.subr.mxu0 0.0
    %1051 = vmatpush1.msra.mxu0 0.0
    %1052 = vmatprep.subr.mxu0 0.0
    %1053 = vmatpush1.msra.mxu0 0.0
    %1054 = vmatprep.subr.mxu0 0.0
    %1055 = vmatpush1.msra.mxu0 0.0
    %1056 = vmatprep.subr.mxu0 0.0
    %1057 = vmatpush1.msra.mxu0 0.0
    %1058 = vmatprep.subr.mxu0 0.0
    %1059 = vmatpush1.msra.mxu0 0.0
    %1060 = vmatprep.subr.mxu0 0.0
    %1061 = vmatpush1.msra.mxu0 0.0
    %1062 = vmatprep.mubr.f32.mxu0 0.0
    %1063 = vmatmul.mubr.f32.gmra.mrb[0].mxu0 %v996
    %v1064 = vpop.f32.mrb[0].mxu0
    %v1065 = vadd.f32 %v991, %v1064
    %v1066 = vpop.f32.mrb[0].mxu0
    %1067 = vdwg.mxu0
    %1068 = vmax.xlane.f32.xlu0 %v1065
    %v1069 = vpop.xlane.xlu0 %1068
    %v1070 = vsub.f32 %v1065, %v1069
    %v1071 = vmul.f32 %v1070, 1.442695
    %v1072 = vpow.pop %v1071
    %1073 = vadd.xlane.f32.xlu0 %v1072
    %v1074 = vpop.xlane.xlu0 %1073
    %v1075 = vlog2.pop %v1074
    %v1076 = vmul.f32 %v1075, 0.6931472
    %v1077 = vsub.f32 %v1070, %v1076
    %1078 = vst [vmem:[#allocation2] sm:$0xff] %v1077
    // Predicated region
    $region26: #{tpu_custom_call.1} parent=1 // pred_check
      _
    $region27: #{tpu_custom_call.1} parent=1 // pred_check_branch
      %1080 = sbr.rel (0) target = $region29
    $region28: #{tpu_custom_call.1} parent=1 // pred_region
      %s1082 = ssub.s32 128, 128
      %1083 = vsyncadd [#allocation3], %s1082
      %s1085 = sshll.u32 [#allocation2], 4
      %s1086 = int_to_ptr.vmem [resolvable:$true] %s1085
      %1088 = dma.vmem_to_hbm [thread:$0]  %s1086, 128, %s6, [#allocation3]
    $region29: #{tpu_custom_call.1} parent=1 // pred_fallthru
      _
    // Predicated region
    $region30: #{tpu_custom_call.1} parent=1 // pred_check
      _
    $region31: #{tpu_custom_call.1} parent=1 // pred_check_branch
      %1090 = sbr.rel (0) target = $region33
    $region32: #{tpu_custom_call.1} parent=1 // pred_region
      %1091 = dma.done [#allocation3], 128
    $region33: #{tpu_custom_call.1} parent=1 // pred_fallthru
      _
    %1092 = vsyncpa [#allocation3], 1

</llo_original>
